<compile_context>
chip_gen: v7x
topology: tpu7x:2x2x1
jax: 0.10.0
libtpu: 0.0.40
codegen_flags: <defaults>
</compile_context>

<pallas_src>
import functools

import jax
import jax.numpy as jnp
from jax.experimental import pallas as pl
from jax.experimental.pallas import tpu as pltpu


def _round_up(x, m):
    return ((x + m - 1) // m) * m


def _cdiv(a, b):
    return -(-a // b)


# ----------------------------- Pallas kernel -------------------------------

def _fused_conv_relu_pool_kernel(p_ref, w_ref, b_ref, o_ref, *, n_win, rows):
    """One chunk of images per grid step.

    p_ref: (n_win * rows, K)  bf16 im2col patches, slab-major by pool offset
    w_ref: (K, COP)           bf16 flattened conv weight, Cout zero-padded to 128
    b_ref: (1, COP)           f32 zero-padded bias
    o_ref: (rows, COP)        pooled output (rows = images_per_step * M2P)
    """
    # Conv as one tall im2col matmul on the MXU, f32 accumulation.
    conv = jnp.dot(p_ref[...], w_ref[...], preferred_element_type=jnp.float32)

    # MaxPool: VPU maximum tree over the n_win sublane-aligned slabs.
    acc = conv[0:rows]
    for t in range(1, n_win):
        acc = jnp.maximum(acc, conv[t * rows:(t + 1) * rows])

    # Bias + ReLU deferred past the pooling max: bias is per-channel (per-lane)
    # so max(x + b) == max(x) + b, and ReLU is monotone so relu(max) == max(relu).
    o_ref[...] = jnp.maximum(acc + b_ref[...], 0.0).astype(o_ref.dtype)


# ------------------------------- JAX glue ----------------------------------

def _build_pooled_patches(x, k, s):
    """x: (N, C, H, W) -> (N, k*k, H2*W2, K) im2col patches grouped by pool offset.

    Slab t = di2*k + dj2 holds, for every pooled pixel (i2, j2), the im2col
    patch of the conv pixel (i2*s + di2, j2*s + dj2) feeding that pooling
    window at offset (di2, dj2).  K is flattened in (C, kh, kw) order to match
    PyTorch's (O, I, kh, kw) weight layout.  Built with direct stride-s^2
    slices of x (no intermediate full-conv-grid im2col materialization).
    """
    # TODO(synk): for large Cin/H/W, gather patches inside the kernel from an
    # HBM-resident input (memory_space=pl.ANY) instead of materializing im2col,
    # and drop the pool-window duplication (pool in-kernel over the H1xW1 grid).
    N, C, H, W = x.shape
    H1 = (H - k) // s + 1
    W1 = (W - k) // s + 1
    H2 = (H1 - k) // s + 1
    W2 = (W1 - k) // s + 1
    ss = s * s

    slabs = []
    for di2 in range(k):
        for dj2 in range(k):
            cols = []
            for di1 in range(k):
                for dj1 in range(k):
                    r0 = di2 * s + di1
                    c0 = dj2 * s + dj1
                    cols.append(x[:, :, r0:r0 + ss * (H2 - 1) + 1:ss,
                                        c0:c0 + ss * (W2 - 1) + 1:ss])
            slab = jnp.stack(cols, axis=2)            # (N, C, k*k, H2, W2)
            slabs.append(slab.reshape(N, C * k * k, H2, W2))
    pat = jnp.stack(slabs, axis=1)                    # (N, k*k, K, H2, W2)
    pat = pat.transpose(0, 1, 3, 4, 2)                # (N, k*k, H2, W2, K)
    return pat.reshape(N, k * k, H2 * W2, C * k * k), (H1, W1, H2, W2)


@functools.partial(jax.jit, static_argnums=(3, 4))
def cnn_forward(x_nchw, weight, bias, kernel_size, stride):
    """Equivalent to Conv2d(Cin, Cout, k, stride) -> ReLU -> MaxPool2d(k, stride).

    x_nchw: (N, Cin, H, W); weight: (Cout, Cin, k, k); bias: (Cout,).
    Returns NCHW, matching the PyTorch module.
    """
    N, Cin, H, W = x_nchw.shape
    Cout = weight.shape[0]
    k, s = kernel_size, stride
    K = Cin * k * k
    n_win = k * k

    H1 = (H - k) // s + 1
    W1 = (W - k) // s + 1
    H2 = (H1 - k) // s + 1
    W2 = (W1 - k) // s + 1
    M2 = H2 * W2

    COP = _round_up(Cout, 128)    # lane-dense output dim -> unmasked stores
    M2P = _round_up(M2, 8)        # sublane-aligned pooled-row count per image

    # Batch chunking: one grid step per chunk of images.  Keep each bf16 patch
    # block <= ~8 MiB so double-buffering fits v7x's smaller scoped VMEM; on
    # v5e/v6e the same block is far under the limit.
    per_img_bytes = n_win * M2P * K * 2
    bc = max(1, min(N, (8 * 1024 * 1024) // max(per_img_bytes, 1)))
    n_chunks = _cdiv(N, bc)
    Np = n_chunks * bc
    rows = bc * M2P               # output rows per grid step (multiple of 8)

    # bf16 MXU operands (f32 accumulation in-kernel).
    xb = x_nchw.astype(jnp.bfloat16)
    patches, _ = _build_pooled_patches(xb, k, s)              # (N, n_win, M2, K)
    patches = jnp.pad(patches,
                      ((0, Np - N), (0, 0), (0, M2P - M2), (0, 0)))
    # -> (n_chunks, n_win * bc * M2P, K), slab-major within each chunk.
    patches = patches.reshape(n_chunks, bc, n_win, M2P, K)
    patches = patches.transpose(0, 2, 1, 3, 4).reshape(n_chunks, n_win * rows, K)

    # No K padding (K stays the full array dim); only Cout padded to 128 lanes.
    w2d = jnp.pad(weight.reshape(Cout, K).T,
                  ((0, 0), (0, COP - Cout))).astype(jnp.bfloat16)
    b2d = jnp.pad(bias.reshape(1, Cout).astype(jnp.float32),
                  ((0, 0), (0, COP - Cout)))

    kernel = functools.partial(_fused_conv_relu_pool_kernel,
                               n_win=n_win, rows=rows)

    pooled = pl.pallas_call(
        kernel,
        out_shape=jax.ShapeDtypeStruct((n_chunks, rows, COP), jnp.float32),
        grid=(n_chunks,),
        in_specs=[
            pl.BlockSpec((None, n_win * rows, K), lambda c: (c, 0, 0)),
            pl.BlockSpec((K, COP), lambda c: (0, 0)),
            pl.BlockSpec((1, COP), lambda c: (0, 0)),
        ],
        out_specs=pl.BlockSpec((None, rows, COP), lambda c: (c, 0, 0)),
        compiler_params=pltpu.CompilerParams(
            dimension_semantics=("parallel",)),
    )(patches, w2d, b2d)

    pooled = pooled.reshape(Np, M2P, COP)[:N, :M2, :Cout]
    pooled = pooled.reshape(N, H2, W2, Cout)
    # TODO(synk): return NHWC directly if the consumer accepts it; this final
    # transpose is pure layout plumbing to match PyTorch's NCHW contract.
    return pooled.transpose(0, 3, 1, 2).astype(x_nchw.dtype)


# ------------------------------ reference ----------------------------------

def reference_forward(x, w, b, k, s):
    conv = jax.lax.conv_general_dilated(
        x, w, window_strides=(s, s), padding="VALID",
        dimension_numbers=("NCHW", "OIHW", "NCHW"))
    conv = jax.nn.relu(conv + b.reshape(1, -1, 1, 1))
    pooled = jax.lax.reduce_window(
        conv, -jnp.inf, jax.lax.max,
        window_dimensions=(1, 1, k, k), window_strides=(1, 1, s, s),
        padding="VALID")
    return pooled


# --------------------------------- main -------------------------------------

if __name__ == "__main__":
    # Module config: CNN(dim_in=4, hidden_dim=32, kernel_size=3, stride=2)
    dim_in, hidden_dim, kernel_size, stride = 4, 32, 3, 2
    N, H, W = 2, 16, 16

    key = jax.random.PRNGKey(0)
    kx, kw, kb = jax.random.split(key, 3)
    x = jax.random.normal(kx, (N, dim_in, H, W), dtype=jnp.float32)
    weight = jax.random.normal(
        kw, (hidden_dim, dim_in, kernel_size, kernel_size),
        dtype=jnp.float32) * 0.1
    bias = jax.random.normal(kb, (hidden_dim,), dtype=jnp.float32) * 0.1

    out = cnn_forward(x, weight, bias, kernel_size, stride)
    out = jax.block_until_ready(out)

    ref = reference_forward(x, weight, bias, kernel_size, stride)
    assert out.shape == ref.shape, (out.shape, ref.shape)
    # bf16 MXU operands (f32 accumulation): tolerance relaxed vs the f32 reference.
    assert jnp.allclose(out, ref, atol=2e-2, rtol=2e-2), "mismatch vs XLA reference"

    print("KERNEL_OK")
</pallas_src>

<mosaic_0001>
module attributes {stable_mosaic.version = 11 : i64} {
  func.func @_fused_conv_relu_pool_kernel(%arg0: i32, %arg1: memref<1x288x36xbf16, #tpu.memory_space<vmem>>, %arg2: memref<36x128xbf16, #tpu.memory_space<vmem>>, %arg3: memref<1x128xf32, #tpu.memory_space<vmem>>, %arg4: memref<1x32x128xf32, #tpu.memory_space<vmem>>) attributes {dimension_semantics = [#tpu.dimension_semantics<parallel>], iteration_bounds = array<i64: 1>, scalar_prefetch = 0 : i64, scratch_operands = 0 : i64, tpu.core_type = #tpu.core_type<tc>, window_params = [{transform_indices = @transform_0, window_bounds = array<i64: 1, 288, 36>}, {pipeline_mode = #tpu.pipeline_mode<synchronous>, transform_indices = @transform_1, window_bounds = array<i64: 36, 128>}, {pipeline_mode = #tpu.pipeline_mode<synchronous>, transform_indices = @transform_2, window_bounds = array<i64: 1, 128>}, {transform_indices = @transform_3, window_bounds = array<i64: 1, 32, 128>}]} {
    %c0 = arith.constant 0 : index
    %c0_0 = arith.constant 0 : index
    %c0_1 = arith.constant 0 : index
    %0 = vector.load %arg1[%c0, %c0_0, %c0_1] : memref<1x288x36xbf16, #tpu.memory_space<vmem>>, vector<1x288x36xbf16>
    %1 = vector.shape_cast %0 : vector<1x288x36xbf16> to vector<288x36xbf16>
    %c0_2 = arith.constant 0 : index
    %c0_3 = arith.constant 0 : index
    %2 = vector.load %arg2[%c0_2, %c0_3] : memref<36x128xbf16, #tpu.memory_space<vmem>>, vector<36x128xbf16>
    %cst = arith.constant dense<0.000000e+00> : vector<288x128xf32>
    %3 = tpu.matmul %1, %2, %cst {dimension_numbers = #tpu.dot_dimension_numbers<[1], [0], [0], [1], [0, 0, 1, 1], [], []>} : vector<288x36xbf16>, vector<36x128xbf16>, vector<288x128xf32> -> vector<288x128xf32>
    %4 = vector.extract_strided_slice %3 {offsets = [0, 0], sizes = [32, 128], strides = [1, 1]} : vector<288x128xf32> to vector<32x128xf32>
    %5 = vector.extract_strided_slice %3 {offsets = [32, 0], sizes = [32, 128], strides = [1, 1]} : vector<288x128xf32> to vector<32x128xf32>
    %6 = arith.maximumf %4, %5 : vector<32x128xf32>
    %7 = vector.extract_strided_slice %3 {offsets = [64, 0], sizes = [32, 128], strides = [1, 1]} : vector<288x128xf32> to vector<32x128xf32>
    %8 = arith.maximumf %6, %7 : vector<32x128xf32>
    %9 = vector.extract_strided_slice %3 {offsets = [96, 0], sizes = [32, 128], strides = [1, 1]} : vector<288x128xf32> to vector<32x128xf32>
    %10 = arith.maximumf %8, %9 : vector<32x128xf32>
    %11 = vector.extract_strided_slice %3 {offsets = [128, 0], sizes = [32, 128], strides = [1, 1]} : vector<288x128xf32> to vector<32x128xf32>
    %12 = arith.maximumf %10, %11 : vector<32x128xf32>
    %13 = vector.extract_strided_slice %3 {offsets = [160, 0], sizes = [32, 128], strides = [1, 1]} : vector<288x128xf32> to vector<32x128xf32>
    %14 = arith.maximumf %12, %13 : vector<32x128xf32>
    %15 = vector.extract_strided_slice %3 {offsets = [192, 0], sizes = [32, 128], strides = [1, 1]} : vector<288x128xf32> to vector<32x128xf32>
    %16 = arith.maximumf %14, %15 : vector<32x128xf32>
    %17 = vector.extract_strided_slice %3 {offsets = [224, 0], sizes = [32, 128], strides = [1, 1]} : vector<288x128xf32> to vector<32x128xf32>
    %18 = arith.maximumf %16, %17 : vector<32x128xf32>
    %19 = vector.extract_strided_slice %3 {offsets = [256, 0], sizes = [32, 128], strides = [1, 1]} : vector<288x128xf32> to vector<32x128xf32>
    %20 = arith.maximumf %18, %19 : vector<32x128xf32>
    %c0_4 = arith.constant 0 : index
    %c0_5 = arith.constant 0 : index
    %21 = vector.load %arg3[%c0_4, %c0_5] : memref<1x128xf32, #tpu.memory_space<vmem>>, vector<1x128xf32>
    %22 = vector.broadcast %21 : vector<1x128xf32> to vector<32x128xf32>
    %23 = arith.addf %20, %22 : vector<32x128xf32>
    %cst_6 = arith.constant 0.000000e+00 : f32
    %24 = vector.broadcast %cst_6 : f32 to vector<32x128xf32>
    %25 = arith.maximumf %23, %24 : vector<32x128xf32>
    %c0_7 = arith.constant 0 : index
    %c0_8 = arith.constant 0 : index
    %c0_9 = arith.constant 0 : index
    %26 = vector.load %arg4[%c0_7, %c0_8, %c0_9] : memref<1x32x128xf32, #tpu.memory_space<vmem>>, vector<1x32x128xf32>
    %27 = vector.shape_cast %26 : vector<1x32x128xf32> to vector<32x128xf32>
    %28 = vector.shape_cast %25 : vector<32x128xf32> to vector<1x32x128xf32>
    tpu.vector_store %arg4[%c0_7, %c0_8, %c0_9], %28 {strides = array<i32>} : memref<1x32x128xf32, #tpu.memory_space<vmem>>, vector<1x32x128xf32>,
    return
  }
  func.func @transform_0(%arg0: i32) -> (i32, i32, i32) {
    %c0_i32 = arith.constant 0 : i32
    %c0_i32_0 = arith.constant 0 : i32
    %c0_i32_1 = arith.constant 0 : i32
    return %arg0, %c0_i32, %c0_i32_0 : i32, i32, i32
  }
  func.func @transform_1(%arg0: i32) -> (i32, i32) {
    %c0_i32 = arith.constant 0 : i32
    %c0_i32_0 = arith.constant 0 : i32
    %c0_i32_1 = arith.constant 0 : i32
    return %c0_i32, %c0_i32_0 : i32, i32
  }
  func.func @transform_2(%arg0: i32) -> (i32, i32) {
    %c0_i32 = arith.constant 0 : i32
    %c0_i32_0 = arith.constant 0 : i32
    %c0_i32_1 = arith.constant 0 : i32
    return %c0_i32, %c0_i32_0 : i32, i32
  }
  func.func @transform_3(%arg0: i32) -> (i32, i32, i32) {
    %c0_i32 = arith.constant 0 : i32
    %c0_i32_0 = arith.constant 0 : i32
    %c0_i32_1 = arith.constant 0 : i32
    return %arg0, %c0_i32, %c0_i32_0 : i32, i32, i32
  }
}

</mosaic_0001>

<llo_original>
// kernel: cnn_forward.1
$region0: #{cnn_forward.1}
  #allocation0 [shape = 'u32[]', space=smem, size = 0x4, offset = 0x4, fixed_abs, tag = 'smem constant byte address 0x4 - core index']
  #allocation1 [shape = 'u32[144,128]{1,0:T(1,128)}', space=vmem, size = 0x12000, scoped, tag = 'internal scratch']
  %s0 = inlined_call_operand.vmem [shape: bf16[1,288,36], index: 0, kind: input, shape index: {}]
  %s1 = inlined_call_operand.vmem [shape: bf16[36,128], index: 1, kind: input, shape index: {}]
  %s2 = inlined_call_operand.vmem [shape: f32[1,128], index: 2, kind: input, shape index: {}]
  %s3 = inlined_call_operand.vmem [shape: f32[1,32,128], index: 3, kind: output, shape index: {}]
  %s4 = sld [smem:[#allocation0]]
  $region22: #{cnn_forward.1} parent=0
    _
  %s6 = ssub.s32 1, %s4
  %s7 = scalar_select 0, %s6, %s4
  // Predicated region
  $region2: #{cnn_forward.1} parent=0 // pred_check
    _
  $region3: #{cnn_forward.1} parent=0 // pred_check_branch
    %9 = sbr.rel (0) target = $region5
  $region4: #{cnn_forward.1} parent=0 // pred_region
    _
  $region5: #{cnn_forward.1} parent=0 // pred_fallthru
    _
  // Predicated region
  $region6: #{cnn_forward.1} parent=0 // pred_check
    _
  $region7: #{cnn_forward.1} parent=0 // pred_check_branch
    %11 = sbr.rel (0) target = $region9
  $region8: #{cnn_forward.1} parent=0 // pred_region
    _
  $region9: #{cnn_forward.1} parent=0 // pred_fallthru
    _
  // Predicated region
  $region10: #{cnn_forward.1} parent=0 // pred_check
    _
  $region11: #{cnn_forward.1} parent=0 // pred_check_branch
    %13 = sbr.rel (0) target = $region13
  $region12: #{cnn_forward.1} parent=0 // pred_region
    _
  $region13: #{cnn_forward.1} parent=0 // pred_fallthru
    _
  %v15 = vld [vmem:[%s0] sm:$0xf]
  %v16 = vld [vmem:[%s0 + $0x4] sm:$0xf]
  %v17 = vld [vmem:[%s0 + $0x8] sm:$0xf]
  %v18 = vld [vmem:[%s0 + $0xc] sm:$0xf]
  %v19 = vld [vmem:[%s0 + $0x10] sm:$0xf]
  %v20 = vld [vmem:[%s0 + $0x14] sm:$0xf]
  %v21 = vld [vmem:[%s0 + $0x18] sm:$0xf]
  %v22 = vld [vmem:[%s0 + $0x1c] sm:$0xf]
  %v23 = vld [vmem:[%s0 + $0x20] sm:$0xf]
  %v24 = vld [vmem:[%s0 + $0x24] sm:$0xf]
  %v25 = vld [vmem:[%s0 + $0x28] sm:$0xf]
  %v26 = vld [vmem:[%s0 + $0x2c] sm:$0xf]
  %v27 = vld [vmem:[%s0 + $0x30] sm:$0xf]
  %v28 = vld [vmem:[%s0 + $0x34] sm:$0xf]
  %v29 = vld [vmem:[%s0 + $0x38] sm:$0xf]
  %v30 = vld [vmem:[%s0 + $0x3c] sm:$0xf]
  %v31 = vld [vmem:[%s0 + $0x40] sm:$0xf]
  %v32 = vld [vmem:[%s0 + $0x44] sm:$0xf]
  %v33 = vld [vmem:[%s0 + $0x48] sm:$0xf]
  %v34 = vld [vmem:[%s0 + $0x4c] sm:$0xf]
  %v35 = vld [vmem:[%s0 + $0x50] sm:$0xf]
  %v36 = vld [vmem:[%s0 + $0x54] sm:$0xf]
  %v37 = vld [vmem:[%s0 + $0x58] sm:$0xf]
  %v38 = vld [vmem:[%s0 + $0x5c] sm:$0xf]
  %v39 = vld [vmem:[%s0 + $0x60] sm:$0xf]
  %v40 = vld [vmem:[%s0 + $0x64] sm:$0xf]
  %v41 = vld [vmem:[%s0 + $0x68] sm:$0xf]
  %v42 = vld [vmem:[%s0 + $0x6c] sm:$0xf]
  %v43 = vld [vmem:[%s0 + $0x70] sm:$0xf]
  %v44 = vld [vmem:[%s0 + $0x74] sm:$0xf]
  %v45 = vld [vmem:[%s0 + $0x78] sm:$0xf]
  %v46 = vld [vmem:[%s0 + $0x7c] sm:$0xf]
  %v47 = vld [vmem:[%s0 + $0x80] sm:$0xf]
  %v48 = vld [vmem:[%s0 + $0x84] sm:$0xf]
  %v49 = vld [vmem:[%s0 + $0x88] sm:$0xf]
  %v50 = vld [vmem:[%s0 + $0x8c] sm:$0xf]
  %v51 = vld [vmem:[%s1] sm:$0xf]
  %v52 = vld [vmem:[%s1 + $0x4] sm:$0xf]
  %v53 = vld [vmem:[%s1 + $0x8] sm:$0xf]
  %v54 = vld [vmem:[%s1 + $0xc] sm:$0xf]
  %v55 = vld [vmem:[%s1 + $0x10] sm:$0x3]
  %v92 = vunpack.c.l.b16 %v15
  %v93 = vunpack.c.l.b16 %v16
  %v94 = vunpack.c.l.b16 %v17
  %v95 = vunpack.c.l.b16 %v18
  %v96 = vunpack.c.l.b16 %v19
  %v97 = vunpack.c.l.b16 %v20
  %v98 = vunpack.c.l.b16 %v21
  %v99 = vunpack.c.l.b16 %v22
  %v100 = vunpack.c.l.b16 %v23
  %v101 = vunpack.c.l.b16 %v24
  %v102 = vunpack.c.l.b16 %v25
  %v103 = vunpack.c.l.b16 %v26
  %v104 = vunpack.c.l.b16 %v27
  %v105 = vunpack.c.l.b16 %v28
  %v106 = vunpack.c.l.b16 %v29
  %v107 = vunpack.c.l.b16 %v30
  %v108 = vunpack.c.l.b16 %v31
  %v109 = vunpack.c.l.b16 %v32
  %v110 = vunpack.c.l.b16 %v33
  %v111 = vunpack.c.l.b16 %v34
  %v112 = vunpack.c.l.b16 %v35
  %v113 = vunpack.c.l.b16 %v36
  %v114 = vunpack.c.l.b16 %v37
  %v115 = vunpack.c.l.b16 %v38
  %v116 = vunpack.c.l.b16 %v39
  %v117 = vunpack.c.l.b16 %v40
  %v118 = vunpack.c.l.b16 %v41
  %v119 = vunpack.c.l.b16 %v42
  %v120 = vunpack.c.l.b16 %v43
  %v121 = vunpack.c.l.b16 %v44
  %v122 = vunpack.c.l.b16 %v45
  %v123 = vunpack.c.l.b16 %v46
  %v124 = vunpack.c.l.b16 %v47
  %v125 = vunpack.c.l.b16 %v48
  %v126 = vunpack.c.l.b16 %v49
  %v127 = vunpack.c.l.b16 %v50
  %v128 = vpack.c.b16 %v93, %v92
  %v129 = vpack.c.b16 %v95, %v94
  %v130 = vpack.c.b16 %v97, %v96
  %v131 = vpack.c.b16 %v99, %v98
  %v132 = vpack.c.b16 %v101, %v100
  %v133 = vpack.c.b16 %v103, %v102
  %v134 = vpack.c.b16 %v105, %v104
  %v135 = vpack.c.b16 %v107, %v106
  %v136 = vpack.c.b16 %v109, %v108
  %v137 = vpack.c.b16 %v111, %v110
  %v138 = vpack.c.b16 %v113, %v112
  %v139 = vpack.c.b16 %v115, %v114
  %v140 = vpack.c.b16 %v117, %v116
  %v141 = vpack.c.b16 %v119, %v118
  %v142 = vpack.c.b16 %v121, %v120
  %v143 = vpack.c.b16 %v123, %v122
  %v144 = vpack.c.b16 %v125, %v124
  %v145 = vpack.c.b16 %v127, %v126
  %v151 = vunpack.c.l.b16 %v51
  %v152 = vunpack.c.l.b16 %v52
  %v153 = vunpack.c.l.b16 %v53
  %v154 = vunpack.c.l.b16 %v54
  %v155 = vunpack.c.l.b16 %v55
  %v156 = vpack.c.b16 %v152, %v151
  %v157 = vpack.c.b16 %v154, %v153
  %v158 = vpack.c.b16 %v155, %v155
  %vm161 = vcmask 293888
  %v163 = vsel %vm161, %v128, 0
  %v166 = vsel %vm161, %v129, 0
  %v169 = vsel %vm161, %v130, 0
  %v172 = vsel %vm161, %v131, 0
  %v175 = vsel %vm161, %v132, 0
  %v178 = vsel %vm161, %v133, 0
  %v181 = vsel %vm161, %v134, 0
  %v184 = vsel %vm161, %v135, 0
  %v187 = vsel %vm161, %v136, 0
  %v190 = vsel %vm161, %v137, 0
  %v193 = vsel %vm161, %v138, 0
  %v196 = vsel %vm161, %v139, 0
  %v199 = vsel %vm161, %v140, 0
  %v202 = vsel %vm161, %v141, 0
  %v205 = vsel %vm161, %v142, 0
  %v208 = vsel %vm161, %v143, 0
  %v211 = vsel %vm161, %v144, 0
  %v214 = vsel %vm161, %v145, 0
  %vm216 = vcmask 1041408
  %v218 = vsel %vm216, %v158, 0
  %220 = vmatprep.subr.bf16.mxu0 0
  %221 = vmatpush1.bf16.msra.mxu0 %v156
  %222 = vmatprep.subr.bf16.mxu0 0
  %223 = vmatpush1.bf16.msra.mxu0 %v157
  %224 = vmatprep.subr.bf16.mxu0 0
  %225 = vmatpush1.bf16.msra.mxu0 %v218
  %226 = vmatprep.subr.bf16.mxu0 0
  %227 = vmatpush1.bf16.msra.mxu0 0
  %228 = vmatprep.subr.bf16.mxu0 0
  %229 = vmatpush1.bf16.msra.mxu0 0
  %230 = vmatprep.subr.bf16.mxu0 0
  %231 = vmatpush1.bf16.msra.mxu0 0
  %232 = vmatprep.subr.bf16.mxu0 0
  %233 = vmatpush1.bf16.msra.mxu0 0
  %234 = vmatprep.subr.bf16.mxu0 0
  %235 = vmatpush1.bf16.msra.mxu0 0
  %236 = vmatprep.subr.bf16.mxu0 0
  %237 = vmatpush1.bf16.msra.mxu0 0
  %238 = vmatprep.subr.bf16.mxu0 0
  %239 = vmatpush1.bf16.msra.mxu0 0
  %240 = vmatprep.subr.bf16.mxu0 0
  %241 = vmatpush1.bf16.msra.mxu0 0
  %242 = vmatprep.subr.bf16.mxu0 0
  %243 = vmatpush1.bf16.msra.mxu0 0
  %244 = vmatprep.subr.bf16.mxu0 0
  %245 = vmatpush1.bf16.msra.mxu0 0
  %246 = vmatprep.subr.bf16.mxu0 0
  %247 = vmatpush1.bf16.msra.mxu0 0
  %248 = vmatprep.subr.bf16.mxu0 0
  %249 = vmatpush1.bf16.msra.mxu0 0
  %250 = vmatprep.subr.bf16.mxu0 0
  %251 = vmatpush1.bf16.msra.mxu0 0
  %252 = vmatprep.mubr.bf16.mxu0 0
  %253 = vmatmul.mubr.bf16.gmra.mrb[0].mxu0 %v163
  %v254 = vpop.f32.mrb[0].mxu0
  %v255 = vadd.f32 0.0, %v254
  %v256 = vpop.f32.mrb[0].mxu0
  %v257 = vpop.f32.mrb[0].mxu0
  %v258 = vadd.f32 0.0, %v257
  %v259 = vpop.f32.mrb[0].mxu0
  %260 = vmatprep.mubr.bf16.mxu0 0
  %261 = vmatmul.mubr.bf16.gmra.mrb[0].mxu0 %v166
  %v262 = vpop.f32.mrb[0].mxu0
  %v263 = vadd.f32 0.0, %v262
  %v264 = vpop.f32.mrb[0].mxu0
  %v265 = vpop.f32.mrb[0].mxu0
  %v266 = vadd.f32 0.0, %v265
  %v267 = vpop.f32.mrb[0].mxu0
  %268 = vmatprep.mubr.bf16.mxu0 0
  %269 = vmatmul.mubr.bf16.gmra.mrb[0].mxu0 %v169
  %v270 = vpop.f32.mrb[0].mxu0
  %v271 = vadd.f32 0.0, %v270
  %v272 = vpop.f32.mrb[0].mxu0
  %v273 = vpop.f32.mrb[0].mxu0
  %v274 = vadd.f32 0.0, %v273
  %v275 = vpop.f32.mrb[0].mxu0
  %276 = vmatprep.mubr.bf16.mxu0 0
  %277 = vmatmul.mubr.bf16.gmra.mrb[0].mxu0 %v172
  %v278 = vpop.f32.mrb[0].mxu0
  %v279 = vadd.f32 0.0, %v278
  %v280 = vpop.f32.mrb[0].mxu0
  %v281 = vpop.f32.mrb[0].mxu0
  %v282 = vadd.f32 0.0, %v281
  %v283 = vpop.f32.mrb[0].mxu0
  %284 = vmatprep.mubr.bf16.mxu0 0
  %285 = vmatmul.mubr.bf16.gmra.mrb[0].mxu0 %v175
  %v286 = vpop.f32.mrb[0].mxu0
  %v287 = vadd.f32 0.0, %v286
  %v288 = vpop.f32.mrb[0].mxu0
  %v289 = vpop.f32.mrb[0].mxu0
  %v290 = vadd.f32 0.0, %v289
  %v291 = vpop.f32.mrb[0].mxu0
  %292 = vmatprep.mubr.bf16.mxu0 0
  %293 = vmatmul.mubr.bf16.gmra.mrb[0].mxu0 %v178
  %v294 = vpop.f32.mrb[0].mxu0
  %v295 = vadd.f32 0.0, %v294
  %v296 = vpop.f32.mrb[0].mxu0
  %v297 = vpop.f32.mrb[0].mxu0
  %v298 = vadd.f32 0.0, %v297
  %v299 = vpop.f32.mrb[0].mxu0
  %300 = vmatprep.mubr.bf16.mxu0 0
  %301 = vmatmul.mubr.bf16.gmra.mrb[0].mxu0 %v181
  %v302 = vpop.f32.mrb[0].mxu0
  %v303 = vadd.f32 0.0, %v302
  %v304 = vpop.f32.mrb[0].mxu0
  %v305 = vpop.f32.mrb[0].mxu0
  %v306 = vadd.f32 0.0, %v305
  %v307 = vpop.f32.mrb[0].mxu0
  %308 = vmatprep.mubr.bf16.mxu0 0
  %309 = vmatmul.mubr.bf16.gmra.mrb[0].mxu0 %v184
  %v310 = vpop.f32.mrb[0].mxu0
  %v311 = vadd.f32 0.0, %v310
  %v312 = vpop.f32.mrb[0].mxu0
  %v313 = vpop.f32.mrb[0].mxu0
  %v314 = vadd.f32 0.0, %v313
  %v315 = vpop.f32.mrb[0].mxu0
  %316 = vmatprep.mubr.bf16.mxu0 0
  %317 = vmatmul.mubr.bf16.gmra.mrb[0].mxu0 %v187
  %v318 = vpop.f32.mrb[0].mxu0
  %v319 = vadd.f32 0.0, %v318
  %v320 = vpop.f32.mrb[0].mxu0
  %v321 = vpop.f32.mrb[0].mxu0
  %v322 = vadd.f32 0.0, %v321
  %v323 = vpop.f32.mrb[0].mxu0
  %324 = vmatprep.mubr.bf16.mxu0 0
  %325 = vmatmul.mubr.bf16.gmra.mrb[0].mxu0 %v190
  %v326 = vpop.f32.mrb[0].mxu0
  %v327 = vadd.f32 0.0, %v326
  %v328 = vpop.f32.mrb[0].mxu0
  %v329 = vpop.f32.mrb[0].mxu0
  %v330 = vadd.f32 0.0, %v329
  %v331 = vpop.f32.mrb[0].mxu0
  %332 = vmatprep.mubr.bf16.mxu0 0
  %333 = vmatmul.mubr.bf16.gmra.mrb[0].mxu0 %v193
  %v334 = vpop.f32.mrb[0].mxu0
  %v335 = vadd.f32 0.0, %v334
  %v336 = vpop.f32.mrb[0].mxu0
  %v337 = vpop.f32.mrb[0].mxu0
  %v338 = vadd.f32 0.0, %v337
  %v339 = vpop.f32.mrb[0].mxu0
  %340 = vmatprep.mubr.bf16.mxu0 0
  %341 = vmatmul.mubr.bf16.gmra.mrb[0].mxu0 %v196
  %v342 = vpop.f32.mrb[0].mxu0
  %v343 = vadd.f32 0.0, %v342
  %v344 = vpop.f32.mrb[0].mxu0
  %v345 = vpop.f32.mrb[0].mxu0
  %v346 = vadd.f32 0.0, %v345
  %v347 = vpop.f32.mrb[0].mxu0
  %348 = vmatprep.mubr.bf16.mxu0 0
  %349 = vmatmul.mubr.bf16.gmra.mrb[0].mxu0 %v199
  %v350 = vpop.f32.mrb[0].mxu0
  %v351 = vadd.f32 0.0, %v350
  %v352 = vpop.f32.mrb[0].mxu0
  %v353 = vpop.f32.mrb[0].mxu0
  %v354 = vadd.f32 0.0, %v353
  %v355 = vpop.f32.mrb[0].mxu0
  %356 = vmatprep.mubr.bf16.mxu0 0
  %357 = vmatmul.mubr.bf16.gmra.mrb[0].mxu0 %v202
  %v358 = vpop.f32.mrb[0].mxu0
  %v359 = vadd.f32 0.0, %v358
  %v360 = vpop.f32.mrb[0].mxu0
  %v361 = vpop.f32.mrb[0].mxu0
  %v362 = vadd.f32 0.0, %v361
  %v363 = vpop.f32.mrb[0].mxu0
  %364 = vmatprep.mubr.bf16.mxu0 0
  %365 = vmatmul.mubr.bf16.gmra.mrb[0].mxu0 %v205
  %v366 = vpop.f32.mrb[0].mxu0
  %v367 = vadd.f32 0.0, %v366
  %v368 = vpop.f32.mrb[0].mxu0
  %v369 = vpop.f32.mrb[0].mxu0
  %v370 = vadd.f32 0.0, %v369
  %v371 = vpop.f32.mrb[0].mxu0
  %372 = vmatprep.mubr.bf16.mxu0 0
  %373 = vmatmul.mubr.bf16.gmra.mrb[0].mxu0 %v208
  %v374 = vpop.f32.mrb[0].mxu0
  %v375 = vadd.f32 0.0, %v374
  %v376 = vpop.f32.mrb[0].mxu0
  %v377 = vpop.f32.mrb[0].mxu0
  %v378 = vadd.f32 0.0, %v377
  %v379 = vpop.f32.mrb[0].mxu0
  %380 = vmatprep.mubr.bf16.mxu0 0
  %381 = vmatmul.mubr.bf16.gmra.mrb[0].mxu0 %v211
  %v382 = vpop.f32.mrb[0].mxu0
  %v383 = vadd.f32 0.0, %v382
  %v384 = vpop.f32.mrb[0].mxu0
  %v385 = vpop.f32.mrb[0].mxu0
  %v386 = vadd.f32 0.0, %v385
  %v387 = vpop.f32.mrb[0].mxu0
  %388 = vmatprep.mubr.bf16.mxu0 0
  %389 = vmatmul.mubr.bf16.gmra.mrb[0].mxu0 %v214
  %v390 = vpop.f32.mrb[0].mxu0
  %v391 = vadd.f32 0.0, %v390
  %v392 = vpop.f32.mrb[0].mxu0
  %v393 = vpop.f32.mrb[0].mxu0
  %v394 = vadd.f32 0.0, %v393
  %v395 = vpop.f32.mrb[0].mxu0
  %396 = vdwg.mxu0
  %v397 = vmax.f32 %v255, %v271
  %v398 = vmax.f32 %v258, %v274
  %v399 = vmax.f32 %v263, %v279
  %v400 = vmax.f32 %v266, %v282
  %v401 = vmax.f32 %v397, %v287
  %v402 = vmax.f32 %v398, %v290
  %v403 = vmax.f32 %v399, %v295
  %v404 = vmax.f32 %v400, %v298
  %v405 = vmax.f32 %v401, %v303
  %v406 = vmax.f32 %v402, %v306
  %v407 = vmax.f32 %v403, %v311
  %v408 = vmax.f32 %v404, %v314
  %v409 = vmax.f32 %v405, %v319
  %v410 = vmax.f32 %v406, %v322
  %v411 = vmax.f32 %v407, %v327
  %v412 = vmax.f32 %v408, %v330
  %v413 = vmax.f32 %v409, %v335
  %v414 = vmax.f32 %v410, %v338
  %v415 = vmax.f32 %v411, %v343
  %v416 = vmax.f32 %v412, %v346
  %v417 = vmax.f32 %v413, %v351
  %v418 = vmax.f32 %v414, %v354
  %v419 = vmax.f32 %v415, %v359
  %v420 = vmax.f32 %v416, %v362
  %v421 = vmax.f32 %v417, %v367
  %v422 = vmax.f32 %v418, %v370
  %v423 = vmax.f32 %v419, %v375
  %v424 = vmax.f32 %v420, %v378
  %v425 = vmax.f32 %v421, %v383
  %v426 = vmax.f32 %v422, %v386
  %v427 = vmax.f32 %v423, %v391
  %v428 = vmax.f32 %v424, %v394
  %v429 = vld [vmem:[%s2] sm:$0x1]
  %v431 = vlaneseq
  %v432 = vshrl.u32 %v431, 7
  %v433 = vsub.s32 0, %v432
  %v434 = vrot.slane %v429, %v433
  %v436 = vadd.f32 %v425, %v434
  %v437 = vadd.f32 %v426, %v434
  %v438 = vadd.f32 %v427, %v434
  %v439 = vadd.f32 %v428, %v434
  %v440 = vmax.f32 %v436, 0.0
  %v441 = vmax.f32 %v437, 0.0
  %v442 = vmax.f32 %v438, 0.0
  %v443 = vmax.f32 %v439, 0.0
  %444 = vst [vmem:[%s3] sm:$0xff] %v440
  %445 = vst [vmem:[%s3 + $0x8] sm:$0xff] %v441
  %446 = vst [vmem:[%s3 + $0x10] sm:$0xff] %v442
  %447 = vst [vmem:[%s3 + $0x18] sm:$0xff] %v443
  // Predicated region
  $region14: #{cnn_forward.1} parent=0 // pred_check
    _
  $region15: #{cnn_forward.1} parent=0 // pred_check_branch
    %449 = sbr.rel (0) target = $region17
  $region16: #{cnn_forward.1} parent=0 // pred_region
    _
  $region17: #{cnn_forward.1} parent=0 // pred_fallthru
    _
  // Predicated region
  $region18: #{cnn_forward.1} parent=0 // pred_check
    _
  $region19: #{cnn_forward.1} parent=0 // pred_check_branch
    %451 = sbr.rel (0) target = $region21
  $region20: #{cnn_forward.1} parent=0 // pred_region
    _
  $region21: #{cnn_forward.1} parent=0 // pred_fallthru
    _

</llo_original>
